<compile_context>
chip_gen: v7x
topology: tpu7x:2x2x1
jax: 0.10.0
libtpu: 0.0.40
codegen_flags: <defaults>
</compile_context>

<pallas_src>
import functools

import jax
import jax.numpy as jnp
from jax.experimental import pallas as pl
from jax.experimental.pallas import tpu as pltpu


def _relu(x):
    return jnp.maximum(x, 0.0)


def _identity(x):
    return x


def _round_up(v, m):
    return ((v + m - 1) // m) * m


def _sublane_mult(dtype):
    # 8 rows for 32-bit, 16 for 16-bit, 32 for 8-bit packed layouts.
    return max(8, 32 // jnp.dtype(dtype).itemsize)


def _vmem_cap_bytes():
    try:
        info = pltpu.get_tpu_info()
        cap = int(getattr(info, "vmem_capacity_bytes"))
        return max((cap * 3) // 4, 8 << 20)
    except Exception:
        return 48 << 20


def _mlp_kernel(*refs, n_layers, act, out_act, compute_dtype):
    # refs = (x_ref, w0, b0, w1, b1, ..., w_{L-1}, b_{L-1}, o_ref)
    x_ref = refs[0]
    o_ref = refs[-1]
    param_refs = refs[1:-1]

    # x streamed in its native dtype; cast to the MXU compute dtype in VMEM.
    h = x_ref[...].astype(compute_dtype)                # (tm, d_in)
    for j in range(n_layers):
        w = param_refs[2 * j][...]                       # (d_in_j, d_out_j), compute_dtype
        b = param_refs[2 * j + 1][...]                   # (1, d_out_j), f32
        acc = jnp.dot(h, w, preferred_element_type=jnp.float32) + b
        if j != n_layers - 1:
            acc = act(acc)                               # activation in f32
            h = acc.astype(compute_dtype)                # feed next matmul in compute dtype
        else:
            h = acc
    h = out_act(h)
    o_ref[...] = h.astype(o_ref.dtype)


def mlp_forward(x, weights, biases, *, act=_relu, out_act=_identity,
                tm_max=2048, compute_dtype=jnp.bfloat16):
    """Fused MLP forward.

    x: (N, d_in).  weights[j]: (d_in_j, d_out_j) (already transposed from the
    PyTorch (out, in) layout).  biases[j]: (d_out_j,).
    Note: feature dims are NOT padded; act/out_act are assumed elementwise
    (row-coupled out_acts like softmax are still fine here since there is no
    feature padding inside the kernel either).
    """
    n_layers = len(weights)
    N, d_in = x.shape
    d_out_last = weights[-1].shape[1]
    out_dtype = x.dtype
    if compute_dtype is None:
        compute_dtype = x.dtype

    x_item = jnp.dtype(x.dtype).itemsize
    c_item = jnp.dtype(compute_dtype).itemsize
    o_item = jnp.dtype(out_dtype).itemsize

    # ---- Params: cast weights to compute dtype, biases -> (1, d_out) f32. --
    ws = [w.astype(compute_dtype) for w in weights]
    bs = [b.astype(jnp.float32).reshape(1, -1) for b in biases]

    # ---- Row tiling: large tiles, >=2 grid steps when possible (megacore). --
    sub = max(_sublane_mult(x.dtype), _sublane_mult(compute_dtype),
              _sublane_mult(out_dtype))
    tm = min(_round_up(tm_max, sub), _round_up(N, sub))
    if N > sub and pl.cdiv(N, tm) < 2:
        # Split the rows into at least two tiles so both TensorCores (v7x)
        # get work; the last tile may be ragged (handled by Pallas masking).
        tm = max(sub, _round_up(pl.cdiv(N, 2), sub))
    grid = (pl.cdiv(N, tm),)

    in_specs = [pl.BlockSpec((tm, d_in), lambda i: (i, 0))]
    args = [x]
    for wp, bp in zip(ws, bs):
        # Constant index_map: block never changes -> DMA'd once, resident in
        # VMEM for all row tiles.
        in_specs.append(pl.BlockSpec(wp.shape, lambda i: (0, 0)))
        in_specs.append(pl.BlockSpec(bp.shape, lambda i: (0, 0)))
        args.append(wp)
        args.append(bp)

    # ---- VMEM budget: ~2x real footprint (+ small headroom floor), capped by
    #      the device's reported VMEM capacity. ------------------------------
    param_bytes = (sum(int(w.size) * c_item for w in ws)
                   + sum(int(b.size) * 4 for b in bs))
    max_width = max([d_in] + [w.shape[1] for w in ws])
    est = (2 * tm * d_in * x_item           # double-buffered input tile
           + 2 * tm * d_out_last * o_item   # double-buffered output tile
           + 2 * param_bytes                # resident weight/bias buffers
           + 3 * tm * max_width * 4)        # f32 intermediates / casts
    vmem_limit = int(min(max(2 * est, 8 << 20), _vmem_cap_bytes()))

    kernel = functools.partial(
        _mlp_kernel, n_layers=n_layers, act=act, out_act=out_act,
        compute_dtype=compute_dtype)

    return pl.pallas_call(
        kernel,
        out_shape=jax.ShapeDtypeStruct((N, d_out_last), out_dtype),
        grid_spec=pl.GridSpec(
            grid=grid,
            in_specs=in_specs,
            out_specs=pl.BlockSpec((tm, d_out_last), lambda i: (i, 0)),
        ),
        compiler_params=pltpu.CompilerParams(
            dimension_semantics=("parallel",),
            vmem_limit_bytes=vmem_limit,
        ),
    )(*args)


def init_mlp_params(key, layers):
    """Deterministic init mimicking nn.Linear defaults:
    U(-1/sqrt(fan_in), 1/sqrt(fan_in)) for both W and b."""
    weights, biases = [], []
    for j in range(len(layers) - 1):
        fan_in, fan_out = layers[j], layers[j + 1]
        key, kw, kb = jax.random.split(key, 3)
        bound = 1.0 / jnp.sqrt(fan_in)
        # Stored already transposed: (in, out).
        w = jax.random.uniform(kw, (fan_in, fan_out), jnp.float32, -bound, bound)
        b = jax.random.uniform(kb, (fan_out,), jnp.float32, -bound, bound)
        weights.append(w)
        biases.append(b)
    return weights, biases


def mlp_reference(x, weights, biases, act=_relu, out_act=_identity):
    h = x
    n_layers = len(weights)
    for j in range(n_layers):
        h = h @ weights[j] + biases[j]
        if j != n_layers - 1:
            h = act(h)
    return out_act(h)


if __name__ == "__main__":
    # MLP(layers=[8, 32, 32, 16], nonlinearity=nn.ReLU,
    #     out_nonlinearity=None, normalize=False)
    layers = [8, 32, 32, 16]

    key = jax.random.PRNGKey(0)
    key, kx1, kx2 = jax.random.split(key, 3)
    weights, biases = init_mlp_params(key, layers)

    # Case 1: f32 compute path, tight numerical check.  N=200 -> two row
    # tiles of ~104 rows (exercises the multi-step parallel grid + the
    # ragged final tile).
    n1 = 200
    x1 = jax.random.normal(kx1, (n1, layers[0]), jnp.float32)
    out1 = jax.block_until_ready(
        mlp_forward(x1, weights, biases, compute_dtype=jnp.float32))
    ref1 = mlp_reference(x1, weights, biases)
    assert out1.shape == (n1, layers[-1]), out1.shape
    assert jnp.allclose(out1, ref1, atol=1e-5, rtol=1e-5), (
        float(jnp.max(jnp.abs(out1 - ref1))))

    # Case 2: default bf16 MXU path (f32 accumulation), looser tolerance.
    n2 = 600
    x2 = jax.random.normal(kx2, (n2, layers[0]), jnp.float32)
    out2 = jax.block_until_ready(mlp_forward(x2, weights, biases))
    ref2 = mlp_reference(x2, weights, biases)
    assert out2.shape == (n2, layers[-1]), out2.shape
    assert jnp.allclose(out2, ref2, atol=6e-2, rtol=6e-2), (
        float(jnp.max(jnp.abs(out2 - ref2))))

    print("KERNEL_OK")
</pallas_src>

<mosaic_0001>
module attributes {stable_mosaic.version = 11 : i64} {
  func.func @_mlp_kernel(%arg0: i32, %arg1: memref<104x8xf32, #tpu.memory_space<vmem>>, %arg2: memref<8x32xf32, #tpu.memory_space<vmem>>, %arg3: memref<1x32xf32, #tpu.memory_space<vmem>>, %arg4: memref<32x32xf32, #tpu.memory_space<vmem>>, %arg5: memref<1x32xf32, #tpu.memory_space<vmem>>, %arg6: memref<32x16xf32, #tpu.memory_space<vmem>>, %arg7: memref<1x16xf32, #tpu.memory_space<vmem>>, %arg8: memref<104x16xf32, #tpu.memory_space<vmem>>) attributes {dimension_semantics = [#tpu.dimension_semantics<parallel>], iteration_bounds = array<i64: 2>, scalar_prefetch = 0 : i64, scratch_operands = 0 : i64, tpu.core_type = #tpu.core_type<tc>, window_params = [{transform_indices = @transform_0, window_bounds = array<i64: 104, 8>}, {pipeline_mode = #tpu.pipeline_mode<synchronous>, transform_indices = @transform_1, window_bounds = array<i64: 8, 32>}, {pipeline_mode = #tpu.pipeline_mode<synchronous>, transform_indices = @transform_2, window_bounds = array<i64: 1, 32>}, {pipeline_mode = #tpu.pipeline_mode<synchronous>, transform_indices = @transform_3, window_bounds = array<i64: 32, 32>}, {pipeline_mode = #tpu.pipeline_mode<synchronous>, transform_indices = @transform_4, window_bounds = array<i64: 1, 32>}, {pipeline_mode = #tpu.pipeline_mode<synchronous>, transform_indices = @transform_5, window_bounds = array<i64: 32, 16>}, {pipeline_mode = #tpu.pipeline_mode<synchronous>, transform_indices = @transform_6, window_bounds = array<i64: 1, 16>}, {transform_indices = @transform_7, window_bounds = array<i64: 104, 16>}]} {
    %c0 = arith.constant 0 : index
    %c0_0 = arith.constant 0 : index
    %0 = vector.load %arg1[%c0, %c0_0] : memref<104x8xf32, #tpu.memory_space<vmem>>, vector<104x8xf32>
    %c0_1 = arith.constant 0 : index
    %c0_2 = arith.constant 0 : index
    %1 = vector.load %arg2[%c0_1, %c0_2] : memref<8x32xf32, #tpu.memory_space<vmem>>, vector<8x32xf32>
    %c0_3 = arith.constant 0 : index
    %c0_4 = arith.constant 0 : index
    %2 = vector.load %arg3[%c0_3, %c0_4] : memref<1x32xf32, #tpu.memory_space<vmem>>, vector<1x32xf32>
    %cst = arith.constant dense<0.000000e+00> : vector<104x32xf32>
    %3 = tpu.matmul %0, %1, %cst {dimension_numbers = #tpu.dot_dimension_numbers<[1], [0], [0], [1], [0, 0, 1, 1], [], []>} : vector<104x8xf32>, vector<8x32xf32>, vector<104x32xf32> -> vector<104x32xf32>
    %4 = vector.broadcast %2 : vector<1x32xf32> to vector<104x32xf32>
    %5 = arith.addf %3, %4 : vector<104x32xf32>
    %cst_5 = arith.constant 0.000000e+00 : f32
    %6 = vector.broadcast %cst_5 : f32 to vector<104x32xf32>
    %7 = arith.maximumf %5, %6 : vector<104x32xf32>
    %c0_6 = arith.constant 0 : index
    %c0_7 = arith.constant 0 : index
    %8 = vector.load %arg4[%c0_6, %c0_7] : memref<32x32xf32, #tpu.memory_space<vmem>>, vector<32x32xf32>
    %c0_8 = arith.constant 0 : index
    %c0_9 = arith.constant 0 : index
    %9 = vector.load %arg5[%c0_8, %c0_9] : memref<1x32xf32, #tpu.memory_space<vmem>>, vector<1x32xf32>
    %cst_10 = arith.constant dense<0.000000e+00> : vector<104x32xf32>
    %10 = tpu.matmul %7, %8, %cst_10 {dimension_numbers = #tpu.dot_dimension_numbers<[1], [0], [0], [1], [0, 0, 1, 1], [], []>} : vector<104x32xf32>, vector<32x32xf32>, vector<104x32xf32> -> vector<104x32xf32>
    %11 = vector.broadcast %9 : vector<1x32xf32> to vector<104x32xf32>
    %12 = arith.addf %10, %11 : vector<104x32xf32>
    %cst_11 = arith.constant 0.000000e+00 : f32
    %13 = vector.broadcast %cst_11 : f32 to vector<104x32xf32>
    %14 = arith.maximumf %12, %13 : vector<104x32xf32>
    %c0_12 = arith.constant 0 : index
    %c0_13 = arith.constant 0 : index
    %15 = vector.load %arg6[%c0_12, %c0_13] : memref<32x16xf32, #tpu.memory_space<vmem>>, vector<32x16xf32>
    %c0_14 = arith.constant 0 : index
    %c0_15 = arith.constant 0 : index
    %16 = vector.load %arg7[%c0_14, %c0_15] : memref<1x16xf32, #tpu.memory_space<vmem>>, vector<1x16xf32>
    %cst_16 = arith.constant dense<0.000000e+00> : vector<104x16xf32>
    %17 = tpu.matmul %14, %15, %cst_16 {dimension_numbers = #tpu.dot_dimension_numbers<[1], [0], [0], [1], [0, 0, 1, 1], [], []>} : vector<104x32xf32>, vector<32x16xf32>, vector<104x16xf32> -> vector<104x16xf32>
    %18 = vector.broadcast %16 : vector<1x16xf32> to vector<104x16xf32>
    %19 = arith.addf %17, %18 : vector<104x16xf32>
    %c0_17 = arith.constant 0 : index
    %c0_18 = arith.constant 0 : index
    %20 = vector.load %arg8[%c0_17, %c0_18] : memref<104x16xf32, #tpu.memory_space<vmem>>, vector<104x16xf32>
    tpu.vector_store %arg8[%c0_17, %c0_18], %19 {strides = array<i32>} : memref<104x16xf32, #tpu.memory_space<vmem>>, vector<104x16xf32>,
    return
  }
  func.func @transform_0(%arg0: i32) -> (i32, i32) {
    %c0_i32 = arith.constant 0 : i32
    %c0_i32_0 = arith.constant 0 : i32
    return %arg0, %c0_i32 : i32, i32
  }
  func.func @transform_1(%arg0: i32) -> (i32, i32) {
    %c0_i32 = arith.constant 0 : i32
    %c0_i32_0 = arith.constant 0 : i32
    %c0_i32_1 = arith.constant 0 : i32
    return %c0_i32, %c0_i32_0 : i32, i32
  }
  func.func @transform_2(%arg0: i32) -> (i32, i32) {
    %c0_i32 = arith.constant 0 : i32
    %c0_i32_0 = arith.constant 0 : i32
    %c0_i32_1 = arith.constant 0 : i32
    return %c0_i32, %c0_i32_0 : i32, i32
  }
  func.func @transform_3(%arg0: i32) -> (i32, i32) {
    %c0_i32 = arith.constant 0 : i32
    %c0_i32_0 = arith.constant 0 : i32
    %c0_i32_1 = arith.constant 0 : i32
    return %c0_i32, %c0_i32_0 : i32, i32
  }
  func.func @transform_4(%arg0: i32) -> (i32, i32) {
    %c0_i32 = arith.constant 0 : i32
    %c0_i32_0 = arith.constant 0 : i32
    %c0_i32_1 = arith.constant 0 : i32
    return %c0_i32, %c0_i32_0 : i32, i32
  }
  func.func @transform_5(%arg0: i32) -> (i32, i32) {
    %c0_i32 = arith.constant 0 : i32
    %c0_i32_0 = arith.constant 0 : i32
    %c0_i32_1 = arith.constant 0 : i32
    return %c0_i32, %c0_i32_0 : i32, i32
  }
  func.func @transform_6(%arg0: i32) -> (i32, i32) {
    %c0_i32 = arith.constant 0 : i32
    %c0_i32_0 = arith.constant 0 : i32
    %c0_i32_1 = arith.constant 0 : i32
    return %c0_i32, %c0_i32_0 : i32, i32
  }
  func.func @transform_7(%arg0: i32) -> (i32, i32) {
    %c0_i32 = arith.constant 0 : i32
    %c0_i32_0 = arith.constant 0 : i32
    return %arg0, %c0_i32 : i32, i32
  }
}

</mosaic_0001>

<llo_original>
// kernel: tpu_custom_call.1
$region0: #{tpu_custom_call.1}
  #allocation0 [shape = 'u32[]', space=smem, size = 0x4, offset = 0x4, fixed_abs, tag = 'smem constant byte address 0x4 - core index']
  #allocation1 [shape = 'u32[144,128]{1,0:T(1,128)}', space=vmem, size = 0x12000, scoped, tag = 'internal scratch']
  %s0 = inlined_call_operand.vmem [shape: f32[200,8], index: 0, kind: input, shape index: {}]
  %s1 = inlined_call_operand.vmem [shape: f32[8,32], index: 1, kind: input, shape index: {}]
  %s2 = inlined_call_operand.vmem [shape: f32[1,32], index: 2, kind: input, shape index: {}]
  %s3 = inlined_call_operand.vmem [shape: f32[32,32], index: 3, kind: input, shape index: {}]
  %s4 = inlined_call_operand.vmem [shape: f32[1,32], index: 4, kind: input, shape index: {}]
  %s5 = inlined_call_operand.vmem [shape: f32[32,16], index: 5, kind: input, shape index: {}]
  %s6 = inlined_call_operand.vmem [shape: f32[1,16], index: 6, kind: input, shape index: {}]
  %s7 = inlined_call_operand.vmem [shape: f32[200,16], index: 7, kind: output, shape index: {}]
  %s8 = sld [smem:[#allocation0]]
  $region109: #{tpu_custom_call.1} parent=0
    _
  %s10 = ssub.s32 1, %s8
  %s11 = scalar_select 0, %s10, %s8
  $region1: #{tpu_custom_call.1} parent=0
    #allocation2 [shape = 'u8[106496]{0}', space=vmem, size = 0x1a000, scoped, tag = 'output window, operand 0']
    loop: start=0, step=1, limit=4
    $region2: #{tpu_custom_call.1} parent=1 // loop_pre_header
      _
    $region3: #{tpu_custom_call.1} parent=1 // loop_header
      %s13 = sphi 0, %s17
      %p14 = scmp.ge.s32.totalorder %s13, 4
      %s23 = sphi 0, %s25
      %s26 = sphi 0, %s23
      %s27 = sphi 0, %s26
      %s43 = sphi 0, %s27
      %s47 = sphi 0, %s47
      %s49 = sphi 0, %s47
      %s50 = sphi 0, %s49
      %s64 = sphi 0, %s50
      %s68 = sphi 0, %s68
      %s70 = sphi 0, %s68
      %s71 = sphi 0, %s70
      %s85 = sphi 0, %s71
      %s89 = sphi 0, %s89
      %s91 = sphi 0, %s89
      %s92 = sphi 0, %s91
      %s106 = sphi 0, %s92
      %s110 = sphi 0, %s110
      %s112 = sphi 0, %s110
      %s113 = sphi 0, %s112
      %s127 = sphi 0, %s113
      %s131 = sphi 0, %s131
      %s133 = sphi 0, %s131
      %s134 = sphi 0, %s133
      %s148 = sphi 0, %s134
      %s152 = sphi 0, %s152
      %s154 = sphi 0, %s152
      %s155 = sphi 0, %s154
      %s169 = sphi 0, %s155
      %s175 = sphi 0, %s177
      %s178 = sphi 0, %s175
      %s179 = sphi 0, %s178
      %s195 = sphi 0, %s179
    $region4: #{tpu_custom_call.1} parent=1 // loop_header_branch
      %16 = sbr.rel (%p14) target = $region8
    $region5: #{tpu_custom_call.1} parent=1 // loop_body
      %s18 = ssub.s32 %s13, 1
      %s19 = ssub.s32 %s13, 2
      %s20 = sadd.s32 %s13, 1
      %s21 = ssub.s32 %s13, %s20
      %p22 = scmp.eq.s32.totalorder %s21, 0
      %s24 = sadd.s32 %s23, 1
      %s25 = scalar_select %p22, %s23, %s24
      %p28 = pneg %p22
      %p29 = scmp.eq.s32.totalorder %s13, 1
      %p30 = por %p28, %p29
      %p31 = scmp.ne.s32.totalorder %s23, %s26
      %p32 = scmp.eq.s32.totalorder %s13, 0
      %p33 = por %p31, %p32
      %p34 = scmp.ne.s32.totalorder %s23, %s26
      %p35 = scmp.eq.s32.totalorder %s18, 1
      %p36 = por %p34, %p35
      %p37 = scmp.ne.s32.totalorder %s26, %s27
      %p38 = scmp.eq.s32.totalorder %s18, 0
      %p39 = por %p37, %p38
      %p40 = scmp.ne.s32.totalorder %s26, %s27
      %p41 = scmp.eq.s32.totalorder %s19, 1
      %p42 = por %p40, %p41
      %p44 = scmp.ne.s32.totalorder %s27, %s43
      %p45 = scmp.eq.s32.totalorder %s19, 0
      %p46 = por %p44, %p45
      %s48 = sadd.s32 %s47, 1
      %p51 = scmp.eq.s32.totalorder %s13, 1
      %p52 = scmp.ne.s32.totalorder %s47, %s49
      %p53 = scmp.eq.s32.totalorder %s13, 0
      %p54 = por %p52, %p53
      %p55 = scmp.ne.s32.totalorder %s47, %s49
      %p56 = scmp.eq.s32.totalorder %s18, 1
      %p57 = por %p55, %p56
      %p58 = scmp.ne.s32.totalorder %s49, %s50
      %p59 = scmp.eq.s32.totalorder %s18, 0
      %p60 = por %p58, %p59
      %p61 = scmp.ne.s32.totalorder %s49, %s50
      %p62 = scmp.eq.s32.totalorder %s19, 1
      %p63 = por %p61, %p62
      %p65 = scmp.ne.s32.totalorder %s50, %s64
      %p66 = scmp.eq.s32.totalorder %s19, 0
      %p67 = por %p65, %p66
      %s69 = sadd.s32 %s68, 1
      %p72 = scmp.eq.s32.totalorder %s13, 1
      %p73 = scmp.ne.s32.totalorder %s68, %s70
      %p74 = scmp.eq.s32.totalorder %s13, 0
      %p75 = por %p73, %p74
      %p76 = scmp.ne.s32.totalorder %s68, %s70
      %p77 = scmp.eq.s32.totalorder %s18, 1
      %p78 = por %p76, %p77
      %p79 = scmp.ne.s32.totalorder %s70, %s71
      %p80 = scmp.eq.s32.totalorder %s18, 0
      %p81 = por %p79, %p80
      %p82 = scmp.ne.s32.totalorder %s70, %s71
      %p83 = scmp.eq.s32.totalorder %s19, 1
      %p84 = por %p82, %p83
      %p86 = scmp.ne.s32.totalorder %s71, %s85
      %p87 = scmp.eq.s32.totalorder %s19, 0
      %p88 = por %p86, %p87
      %s90 = sadd.s32 %s89, 1
      %p93 = scmp.eq.s32.totalorder %s13, 1
      %p94 = scmp.ne.s32.totalorder %s89, %s91
      %p95 = scmp.eq.s32.totalorder %s13, 0
      %p96 = por %p94, %p95
      %p97 = scmp.ne.s32.totalorder %s89, %s91
      %p98 = scmp.eq.s32.totalorder %s18, 1
      %p99 = por %p97, %p98
      %p100 = scmp.ne.s32.totalorder %s91, %s92
      %p101 = scmp.eq.s32.totalorder %s18, 0
      %p102 = por %p100, %p101
      %p103 = scmp.ne.s32.totalorder %s91, %s92
      %p104 = scmp.eq.s32.totalorder %s19, 1
      %p105 = por %p103, %p104
      %p107 = scmp.ne.s32.totalorder %s92, %s106
      %p108 = scmp.eq.s32.totalorder %s19, 0
      %p109 = por %p107, %p108
      %s111 = sadd.s32 %s110, 1
      %p114 = scmp.eq.s32.totalorder %s13, 1
      %p115 = scmp.ne.s32.totalorder %s110, %s112
      %p116 = scmp.eq.s32.totalorder %s13, 0
      %p117 = por %p115, %p116
      %p118 = scmp.ne.s32.totalorder %s110, %s112
      %p119 = scmp.eq.s32.totalorder %s18, 1
      %p120 = por %p118, %p119
      %p121 = scmp.ne.s32.totalorder %s112, %s113
      %p122 = scmp.eq.s32.totalorder %s18, 0
      %p123 = por %p121, %p122
      %p124 = scmp.ne.s32.totalorder %s112, %s113
      %p125 = scmp.eq.s32.totalorder %s19, 1
      %p126 = por %p124, %p125
      %p128 = scmp.ne.s32.totalorder %s113, %s127
      %p129 = scmp.eq.s32.totalorder %s19, 0
      %p130 = por %p128, %p129
      %s132 = sadd.s32 %s131, 1
      %p135 = scmp.eq.s32.totalorder %s13, 1
      %p136 = scmp.ne.s32.totalorder %s131, %s133
      %p137 = scmp.eq.s32.totalorder %s13, 0
      %p138 = por %p136, %p137
      %p139 = scmp.ne.s32.totalorder %s131, %s133
      %p140 = scmp.eq.s32.totalorder %s18, 1
      %p141 = por %p139, %p140
      %p142 = scmp.ne.s32.totalorder %s133, %s134
      %p143 = scmp.eq.s32.totalorder %s18, 0
      %p144 = por %p142, %p143
      %p145 = scmp.ne.s32.totalorder %s133, %s134
      %p146 = scmp.eq.s32.totalorder %s19, 1
      %p147 = por %p145, %p146
      %p149 = scmp.ne.s32.totalorder %s134, %s148
      %p150 = scmp.eq.s32.totalorder %s19, 0
      %p151 = por %p149, %p150
      %s153 = sadd.s32 %s152, 1
      %p156 = scmp.eq.s32.totalorder %s13, 1
      %p157 = scmp.ne.s32.totalorder %s152, %s154
      %p158 = scmp.eq.s32.totalorder %s13, 0
      %p159 = por %p157, %p158
      %p160 = scmp.ne.s32.totalorder %s152, %s154
      %p161 = scmp.eq.s32.totalorder %s18, 1
      %p162 = por %p160, %p161
      %p163 = scmp.ne.s32.totalorder %s154, %s155
      %p164 = scmp.eq.s32.totalorder %s18, 0
      %p165 = por %p163, %p164
      %p166 = scmp.ne.s32.totalorder %s154, %s155
      %p167 = scmp.eq.s32.totalorder %s19, 1
      %p168 = por %p166, %p167
      %p170 = scmp.ne.s32.totalorder %s155, %s169
      %p171 = scmp.eq.s32.totalorder %s19, 0
      %p172 = por %p170, %p171
      %s173 = ssub.s32 %s13, %s20
      %p174 = scmp.eq.s32.totalorder %s173, 0
      %s176 = sadd.s32 %s175, 1
      %s177 = scalar_select %p174, %s175, %s176
      %p180 = pneg %p174
      %p181 = scmp.eq.s32.totalorder %s13, 1
      %p182 = por %p180, %p181
      %p183 = scmp.ne.s32.totalorder %s175, %s178
      %p184 = scmp.eq.s32.totalorder %s13, 0
      %p185 = por %p183, %p184
      %p186 = scmp.ne.s32.totalorder %s175, %s178
      %p187 = scmp.eq.s32.totalorder %s18, 1
      %p188 = por %p186, %p187
      %p189 = scmp.ne.s32.totalorder %s178, %s179
      %p190 = scmp.eq.s32.totalorder %s18, 0
      %p191 = por %p189, %p190
      %p192 = scmp.ne.s32.totalorder %s178, %s179
      %p193 = scmp.eq.s32.totalorder %s19, 1
      %p194 = por %p192, %p193
      %p196 = scmp.ne.s32.totalorder %s179, %s195
      %p197 = scmp.eq.s32.totalorder %s19, 0
      %p198 = por %p196, %p197
      %p199 = scmp.le.s32.totalorder 1, %s13
      %p200 = scmp.lt.s32.totalorder %s13, 3
      %p201 = pnand %p199, %p200
      %p202 = pneg %p201
      // Predicated region
      $region9: #{tpu_custom_call.1} parent=5 // pred_check
        _
      $region10: #{tpu_custom_call.1} parent=5 // pred_check_branch
        %204 = sbr.rel (%p201) target = $region12
      $region11: #{tpu_custom_call.1} parent=5 // pred_region
        %s205 = ssub.s32 %s13, 1
        // Predicated region
        $region13: #{tpu_custom_call.1} parent=11 // pred_check
          %p206 = pneg %p60
        $region14: #{tpu_custom_call.1} parent=11 // pred_check_branch
          %208 = sbr.rel (%p206) target = $region16
        $region15: #{tpu_custom_call.1} parent=11 // pred_region
          _
        $region16: #{tpu_custom_call.1} parent=11 // pred_fallthru
          _
        // Predicated region
        $region17: #{tpu_custom_call.1} parent=11 // pred_check
          %p209 = pneg %p81
        $region18: #{tpu_custom_call.1} parent=11 // pred_check_branch
          %211 = sbr.rel (%p209) target = $region20
        $region19: #{tpu_custom_call.1} parent=11 // pred_region
          _
        $region20: #{tpu_custom_call.1} parent=11 // pred_fallthru
          _
        // Predicated region
        $region21: #{tpu_custom_call.1} parent=11 // pred_check
          %p212 = pneg %p102
        $region22: #{tpu_custom_call.1} parent=11 // pred_check_branch
          %214 = sbr.rel (%p212) target = $region24
        $region23: #{tpu_custom_call.1} parent=11 // pred_region
          _
        $region24: #{tpu_custom_call.1} parent=11 // pred_fallthru
          _
        // Predicated region
        $region25: #{tpu_custom_call.1} parent=11 // pred_check
          %p215 = pneg %p123
        $region26: #{tpu_custom_call.1} parent=11 // pred_check_branch
          %217 = sbr.rel (%p215) target = $region28
        $region27: #{tpu_custom_call.1} parent=11 // pred_region
          _
        $region28: #{tpu_custom_call.1} parent=11 // pred_fallthru
          _
        // Predicated region
        $region29: #{tpu_custom_call.1} parent=11 // pred_check
          %p218 = pneg %p144
        $region30: #{tpu_custom_call.1} parent=11 // pred_check_branch
          %220 = sbr.rel (%p218) target = $region32
        $region31: #{tpu_custom_call.1} parent=11 // pred_region
          _
        $region32: #{tpu_custom_call.1} parent=11 // pred_fallthru
          _
        // Predicated region
        $region33: #{tpu_custom_call.1} parent=11 // pred_check
          %p221 = pneg %p165
        $region34: #{tpu_custom_call.1} parent=11 // pred_check_branch
          %223 = sbr.rel (%p221) target = $region36
        $region35: #{tpu_custom_call.1} parent=11 // pred_region
          _
        $region36: #{tpu_custom_call.1} parent=11 // pred_fallthru
          _
      $region12: #{tpu_custom_call.1} parent=5 // pred_fallthru
        _
      %p224 = scmp.lt.s32.totalorder %s13, 2
      // Predicated region
      $region37: #{tpu_custom_call.1} parent=5 // pred_check
        %p225 = pneg %p224
      $region38: #{tpu_custom_call.1} parent=5 // pred_check_branch
        %227 = sbr.rel (%p225) target = $region40
      $region39: #{tpu_custom_call.1} parent=5 // pred_region
        // Predicated region
        $region41: #{tpu_custom_call.1} parent=39 // pred_check
          %p228 = pneg %p33
        $region42: #{tpu_custom_call.1} parent=39 // pred_check_branch
          %230 = sbr.rel (%p228) target = $region44
        $region43: #{tpu_custom_call.1} parent=39 // pred_region
          %s231 = smul.u32 13, %s13
          %s232 = ssub.s32 25, %s231
          %p233 = scmp.lt.s32.totalorder %s232, 13
          %s234 = scalar_select %p233, %s232, 13
          %s235 = smul.u32 128, %s234
          %p236 = scmp.lt.s32.totalorder %s231, 24
          %s237 = scalar_select %p236, %s231, 24
          %s238 = smul.addr %s237, 8
          %s239 = scalar_lea.vmem %s0, %s238
          %s240 = smul.u32 13, %s13
          %s241 = ssub.s32 25, %s240
          %p242 = scmp.lt.s32.totalorder %s241, 13
          %s243 = scalar_select %p242, %s241, 13
          %s244 = smul.u32 128, %s243
        $region44: #{tpu_custom_call.1} parent=39 // pred_fallthru
          _
      $region40: #{tpu_custom_call.1} parent=5 // pred_fallthru
        _
      %p245 = scmp.le.s32.totalorder 1, %s13
      %p246 = scmp.lt.s32.totalorder %s13, 3
      %p247 = pnand %p245, %p246
      %p248 = pneg %p247
      // Predicated region
      $region45: #{tpu_custom_call.1} parent=5 // pred_check
        _
      $region46: #{tpu_custom_call.1} parent=5 // pred_check_branch
        %250 = sbr.rel (%p247) target = $region48
      $region47: #{tpu_custom_call.1} parent=5 // pred_region
        %s251 = ssub.s32 %s13, 1
        %s252 = smul.u32 13, %s18
        %s253 = ssub.s32 25, %s252
        %p254 = scmp.lt.s32.totalorder %s253, 13
        %s255 = scalar_select %p254, %s253, 13
        %s256 = smul.u32 128, %s255
        %p257 = scmp.lt.s32.totalorder %s252, 24
        %s258 = scalar_select %p257, %s252, 24
        %s259 = smul.addr %s258, 8
        %s260 = scalar_lea.vmem %s0, %s259
        %p261 = pneg %p39
        %p262 = pneg %p36
        %p263 = pneg %p60
        %p264 = pneg %p57
        %p265 = pneg %p81
        %p266 = pneg %p78
        %p267 = pneg %p102
        %p268 = pneg %p99
        %p269 = pneg %p123
        %p270 = pneg %p120
        %p271 = pneg %p144
        %p272 = pneg %p141
        %p273 = pneg %p165
        %p274 = pneg %p162
        %p275 = pneg %p191
        %p276 = pneg %p188
        %s277 = sand.u32 %s178, 1
        %s278 = sand.u32 %s178, 1
        %s279 = smul.addr %s278, 104
        %s280 = scalar_lea.vmem [#allocation2], %s279
        %s281 = smul.u32 13, %s18
        %s282 = ssub.s32 25, %s281
        %p283 = scmp.lt.s32.totalorder %s282, 13
        %s284 = scalar_select %p283, %s282, 13
        %s285 = smul.u32 128, %s284
        %p286 = scmp.lt.s32.totalorder %s281, 24
        %s287 = scalar_select %p286, %s281, 24
        %s288 = smul.addr %s287, 8
        %s289 = scalar_lea.vmem %s0, %s288
        %s290 = smul.u32 13, %s18
        %s291 = ssub.s32 25, %s290
        %p292 = scmp.lt.s32.totalorder %s291, 13
        %s293 = scalar_select %p292, %s291, 13
        %s294 = smul.u32 128, %s293
        %s295 = smul.u32 13, %s18
        %s296 = ssub.s32 25, %s295
        %p297 = scmp.lt.s32.totalorder %s296, 13
        %s298 = scalar_select %p297, %s296, 13
        %s299 = smul.u32 128, %s298
        %v300 = vld [vmem:[%s289] sm:$0xff]
        %v301 = vld [vmem:[%s289 + $0x8] sm:$0xff]
        %v302 = vld [vmem:[%s289 + $0x10] sm:$0xff]
        %v303 = vld [vmem:[%s289 + $0x18] sm:$0xff]
        %v304 = vld [vmem:[%s289 + $0x20] sm:$0xff]
        %v305 = vld [vmem:[%s289 + $0x28] sm:$0xff]
        %v306 = vld [vmem:[%s289 + $0x30] sm:$0xff]
        %v307 = vld [vmem:[%s289 + $0x38] sm:$0xff]
        %v308 = vld [vmem:[%s289 + $0x40] sm:$0xff]
        %v309 = vld [vmem:[%s289 + $0x48] sm:$0xff]
        %v310 = vld [vmem:[%s289 + $0x50] sm:$0xff]
        %v311 = vld [vmem:[%s289 + $0x58] sm:$0xff]
        %v312 = vld [vmem:[%s289 + $0x60] sm:$0xff]
        %v313 = vld [vmem:[%s1] sm:$0xff]
        %v314 = vld [vmem:[%s2] sm:$0x1]
        %v316 = vlaneseq
        %v317 = vshrl.u32 %v316, 7
        %v318 = vsub.s32 0, %v317
        %v319 = vrot.slane %v314, %v318
        %vm321 = vcmask 64512
        %v323 = vsel %vm321, %v300, 0
        %v326 = vsel %vm321, %v301, 0
        %v329 = vsel %vm321, %v302, 0
        %v332 = vsel %vm321, %v303, 0
        %v335 = vsel %vm321, %v304, 0
        %v338 = vsel %vm321, %v305, 0
        %v341 = vsel %vm321, %v306, 0
        %v344 = vsel %vm321, %v307, 0
        %v347 = vsel %vm321, %v308, 0
        %v350 = vsel %vm321, %v309, 0
        %v353 = vsel %vm321, %v310, 0
        %v356 = vsel %vm321, %v311, 0
        %v359 = vsel %vm321, %v312, 0
        %361 = vmatprep.subr.mxu0 0.0
        %362 = vmatpush1.msra.mxu0 %v313
        %363 = vmatprep.subr.mxu0 0.0
        %364 = vmatpush1.msra.mxu0 0.0
        %365 = vmatprep.subr.mxu0 0.0
        %366 = vmatpush1.msra.mxu0 0.0
        %367 = vmatprep.subr.mxu0 0.0
        %368 = vmatpush1.msra.mxu0 0.0
        %369 = vmatprep.subr.mxu0 0.0
        %370 = vmatpush1.msra.mxu0 0.0
        %371 = vmatprep.subr.mxu0 0.0
        %372 = vmatpush1.msra.mxu0 0.0
        %373 = vmatprep.subr.mxu0 0.0
        %374 = vmatpush1.msra.mxu0 0.0
        %375 = vmatprep.subr.mxu0 0.0
        %376 = vmatpush1.msra.mxu0 0.0
        %377 = vmatprep.subr.mxu0 0.0
        %378 = vmatpush1.msra.mxu0 0.0
        %379 = vmatprep.subr.mxu0 0.0
        %380 = vmatpush1.msra.mxu0 0.0
        %381 = vmatprep.subr.mxu0 0.0
        %382 = vmatpush1.msra.mxu0 0.0
        %383 = vmatprep.subr.mxu0 0.0
        %384 = vmatpush1.msra.mxu0 0.0
        %385 = vmatprep.subr.mxu0 0.0
        %386 = vmatpush1.msra.mxu0 0.0
        %387 = vmatprep.subr.mxu0 0.0
        %388 = vmatpush1.msra.mxu0 0.0
        %389 = vmatprep.subr.mxu0 0.0
        %390 = vmatpush1.msra.mxu0 0.0
        %391 = vmatprep.subr.mxu0 0.0
        %392 = vmatpush1.msra.mxu0 0.0
        %393 = vmatprep.subr.mxu0 0.0
        %394 = vmatpush1.msra.mxu0 0.0
        %395 = vmatprep.subr.mxu0 0.0
        %396 = vmatpush1.msra.mxu0 0.0
        %397 = vmatprep.subr.mxu0 0.0
        %398 = vmatpush1.msra.mxu0 0.0
        %399 = vmatprep.subr.mxu0 0.0
        %400 = vmatpush1.msra.mxu0 0.0
        %401 = vmatprep.subr.mxu0 0.0
        %402 = vmatpush1.msra.mxu0 0.0
        %403 = vmatprep.subr.mxu0 0.0
        %404 = vmatpush1.msra.mxu0 0.0
        %405 = vmatprep.subr.mxu0 0.0
        %406 = vmatpush1.msra.mxu0 0.0
        %407 = vmatprep.subr.mxu0 0.0
        %408 = vmatpush1.msra.mxu0 0.0
        %409 = vmatprep.subr.mxu0 0.0
        %410 = vmatpush1.msra.mxu0 0.0
        %411 = vmatprep.subr.mxu0 0.0
        %412 = vmatpush1.msra.mxu0 0.0
        %413 = vmatprep.subr.mxu0 0.0
        %414 = vmatpush1.msra.mxu0 0.0
        %415 = vmatprep.subr.mxu0 0.0
        %416 = vmatpush1.msra.mxu0 0.0
        %417 = vmatprep.subr.mxu0 0.0
        %418 = vmatpush1.msra.mxu0 0.0
        %419 = vmatprep.subr.mxu0 0.0
        %420 = vmatpush1.msra.mxu0 0.0
        %421 = vmatprep.subr.mxu0 0.0
        %422 = vmatpush1.msra.mxu0 0.0
        %423 = vmatprep.subr.mxu0 0.0
        %424 = vmatpush1.msra.mxu0 0.0
        %425 = vmatprep.mubr.f32.mxu0 0.0
        %426 = vmatmul.mubr.f32.gmra.mrb[0].mxu0 %v323
        %v427 = vpop.f32.mrb[0].mxu0
        %v428 = vadd.f32 %v319, %v427
        %v429 = vpop.f32.mrb[0].mxu0
        %430 = vmatprep.mubr.f32.mxu0 0.0
        %431 = vmatmul.mubr.f32.gmra.mrb[0].mxu0 %v326
        %v432 = vpop.f32.mrb[0].mxu0
        %v433 = vadd.f32 %v319, %v432
        %v434 = vpop.f32.mrb[0].mxu0
        %435 = vmatprep.mubr.f32.mxu0 0.0
        %436 = vmatmul.mubr.f32.gmra.mrb[0].mxu0 %v329
        %v437 = vpop.f32.mrb[0].mxu0
        %v438 = vadd.f32 %v319, %v437
        %v439 = vpop.f32.mrb[0].mxu0
        %440 = vmatprep.mubr.f32.mxu0 0.0
        %441 = vmatmul.mubr.f32.gmra.mrb[0].mxu0 %v332
        %v442 = vpop.f32.mrb[0].mxu0
        %v443 = vadd.f32 %v319, %v442
        %v444 = vpop.f32.mrb[0].mxu0
        %445 = vmatprep.mubr.f32.mxu0 0.0
        %446 = vmatmul.mubr.f32.gmra.mrb[0].mxu0 %v335
        %v447 = vpop.f32.mrb[0].mxu0
        %v448 = vadd.f32 %v319, %v447
        %v449 = vpop.f32.mrb[0].mxu0
        %450 = vmatprep.mubr.f32.mxu0 0.0
        %451 = vmatmul.mubr.f32.gmra.mrb[0].mxu0 %v338
        %v452 = vpop.f32.mrb[0].mxu0
        %v453 = vadd.f32 %v319, %v452
        %v454 = vpop.f32.mrb[0].mxu0
        %455 = vmatprep.mubr.f32.mxu0 0.0
        %456 = vmatmul.mubr.f32.gmra.mrb[0].mxu0 %v341
        %v457 = vpop.f32.mrb[0].mxu0
        %v458 = vadd.f32 %v319, %v457
        %v459 = vpop.f32.mrb[0].mxu0
        %460 = vmatprep.mubr.f32.mxu0 0.0
        %461 = vmatmul.mubr.f32.gmra.mrb[0].mxu0 %v344
        %v462 = vpop.f32.mrb[0].mxu0
        %v463 = vadd.f32 %v319, %v462
        %v464 = vpop.f32.mrb[0].mxu0
        %465 = vmatprep.mubr.f32.mxu0 0.0
        %466 = vmatmul.mubr.f32.gmra.mrb[0].mxu0 %v347
        %v467 = vpop.f32.mrb[0].mxu0
        %v468 = vadd.f32 %v319, %v467
        %v469 = vpop.f32.mrb[0].mxu0
        %470 = vmatprep.mubr.f32.mxu0 0.0
        %471 = vmatmul.mubr.f32.gmra.mrb[0].mxu0 %v350
        %v472 = vpop.f32.mrb[0].mxu0
        %v473 = vadd.f32 %v319, %v472
        %v474 = vpop.f32.mrb[0].mxu0
        %475 = vmatprep.mubr.f32.mxu0 0.0
        %476 = vmatmul.mubr.f32.gmra.mrb[0].mxu0 %v353
        %v477 = vpop.f32.mrb[0].mxu0
        %v478 = vadd.f32 %v319, %v477
        %v479 = vpop.f32.mrb[0].mxu0
        %480 = vmatprep.mubr.f32.mxu0 0.0
        %481 = vmatmul.mubr.f32.gmra.mrb[0].mxu0 %v356
        %v482 = vpop.f32.mrb[0].mxu0
        %v483 = vadd.f32 %v319, %v482
        %v484 = vpop.f32.mrb[0].mxu0
        %485 = vmatprep.mubr.f32.mxu0 0.0
        %486 = vmatmul.mubr.f32.gmra.mrb[0].mxu0 %v359
        %v487 = vpop.f32.mrb[0].mxu0
        %v488 = vadd.f32 %v319, %v487
        %v489 = vpop.f32.mrb[0].mxu0
        %490 = vdwg.mxu0
        %v491 = vmax.f32 %v428, 0.0
        %v492 = vmax.f32 %v433, 0.0
        %v493 = vmax.f32 %v438, 0.0
        %v494 = vmax.f32 %v443, 0.0
        %v495 = vmax.f32 %v448, 0.0
        %v496 = vmax.f32 %v453, 0.0
        %v497 = vmax.f32 %v458, 0.0
        %v498 = vmax.f32 %v463, 0.0
        %v499 = vmax.f32 %v468, 0.0
        %v500 = vmax.f32 %v473, 0.0
        %v501 = vmax.f32 %v478, 0.0
        %v502 = vmax.f32 %v483, 0.0
        %v503 = vmax.f32 %v488, 0.0
        %v504 = vld [vmem:[%s3] sm:$0xff]
        %v505 = vld [vmem:[%s3 + $0x8] sm:$0xff]
        %v506 = vld [vmem:[%s3 + $0x10] sm:$0xff]
        %v507 = vld [vmem:[%s3 + $0x18] sm:$0xff]
        %v508 = vld [vmem:[%s4] sm:$0x1]
        %v510 = vlaneseq
        %v511 = vshrl.u32 %v510, 7
        %v512 = vsub.s32 0, %v511
        %v513 = vrot.slane %v508, %v512
        %vm515 = vcmask 261120
        %v517 = vsel %vm515, %v491, 0
        %v520 = vsel %vm515, %v492, 0
        %v523 = vsel %vm515, %v493, 0
        %v526 = vsel %vm515, %v494, 0
        %v529 = vsel %vm515, %v495, 0
        %v532 = vsel %vm515, %v496, 0
        %v535 = vsel %vm515, %v497, 0
        %v538 = vsel %vm515, %v498, 0
        %v541 = vsel %vm515, %v499, 0
        %v544 = vsel %vm515, %v500, 0
        %v547 = vsel %vm515, %v501, 0
        %v550 = vsel %vm515, %v502, 0
        %v553 = vsel %vm515, %v503, 0
        %555 = vmatprep.subr.mxu0 0.0
        %556 = vmatpush1.msra.mxu0 %v504
        %557 = vmatprep.subr.mxu0 0.0
        %558 = vmatpush1.msra.mxu0 %v505
        %559 = vmatprep.subr.mxu0 0.0
        %560 = vmatpush1.msra.mxu0 %v506
        %561 = vmatprep.subr.mxu0 0.0
        %562 = vmatpush1.msra.mxu0 %v507
        %563 = vmatprep.subr.mxu0 0.0
        %564 = vmatpush1.msra.mxu0 0.0
        %565 = vmatprep.subr.mxu0 0.0
        %566 = vmatpush1.msra.mxu0 0.0
        %567 = vmatprep.subr.mxu0 0.0
        %568 = vmatpush1.msra.mxu0 0.0
        %569 = vmatprep.subr.mxu0 0.0
        %570 = vmatpush1.msra.mxu0 0.0
        %571 = vmatprep.subr.mxu0 0.0
        %572 = vmatpush1.msra.mxu0 0.0
        %573 = vmatprep.subr.mxu0 0.0
        %574 = vmatpush1.msra.mxu0 0.0
        %575 = vmatprep.subr.mxu0 0.0
        %576 = vmatpush1.msra.mxu0 0.0
        %577 = vmatprep.subr.mxu0 0.0
        %578 = vmatpush1.msra.mxu0 0.0
        %579 = vmatprep.subr.mxu0 0.0
        %580 = vmatpush1.msra.mxu0 0.0
        %581 = vmatprep.subr.mxu0 0.0
        %582 = vmatpush1.msra.mxu0 0.0
        %583 = vmatprep.subr.mxu0 0.0
        %584 = vmatpush1.msra.mxu0 0.0
        %585 = vmatprep.subr.mxu0 0.0
        %586 = vmatpush1.msra.mxu0 0.0
        %587 = vmatprep.subr.mxu0 0.0
        %588 = vmatpush1.msra.mxu0 0.0
        %589 = vmatprep.subr.mxu0 0.0
        %590 = vmatpush1.msra.mxu0 0.0
        %591 = vmatprep.subr.mxu0 0.0
        %592 = vmatpush1.msra.mxu0 0.0
        %593 = vmatprep.subr.mxu0 0.0
        %594 = vmatpush1.msra.mxu0 0.0
        %595 = vmatprep.subr.mxu0 0.0
        %596 = vmatpush1.msra.mxu0 0.0
        %597 = vmatprep.subr.mxu0 0.0
        %598 = vmatpush1.msra.mxu0 0.0
        %599 = vmatprep.subr.mxu0 0.0
        %600 = vmatpush1.msra.mxu0 0.0
        %601 = vmatprep.subr.mxu0 0.0
        %602 = vmatpush1.msra.mxu0 0.0
        %603 = vmatprep.subr.mxu0 0.0
        %604 = vmatpush1.msra.mxu0 0.0
        %605 = vmatprep.subr.mxu0 0.0
        %606 = vmatpush1.msra.mxu0 0.0
        %607 = vmatprep.subr.mxu0 0.0
        %608 = vmatpush1.msra.mxu0 0.0
        %609 = vmatprep.subr.mxu0 0.0
        %610 = vmatpush1.msra.mxu0 0.0
        %611 = vmatprep.subr.mxu0 0.0
        %612 = vmatpush1.msra.mxu0 0.0
        %613 = vmatprep.subr.mxu0 0.0
        %614 = vmatpush1.msra.mxu0 0.0
        %615 = vmatprep.subr.mxu0 0.0
        %616 = vmatpush1.msra.mxu0 0.0
        %617 = vmatprep.subr.mxu0 0.0
        %618 = vmatpush1.msra.mxu0 0.0
        %619 = vmatprep.mubr.f32.mxu0 0.0
        %620 = vmatmul.mubr.f32.gmra.mrb[0].mxu0 %v517
        %v621 = vpop.f32.mrb[0].mxu0
        %v622 = vadd.f32 %v513, %v621
        %v623 = vpop.f32.mrb[0].mxu0
        %624 = vmatprep.mubr.f32.mxu0 0.0
        %625 = vmatmul.mubr.f32.gmra.mrb[0].mxu0 %v520
        %v626 = vpop.f32.mrb[0].mxu0
        %v627 = vadd.f32 %v513, %v626
        %v628 = vpop.f32.mrb[0].mxu0
        %629 = vmatprep.mubr.f32.mxu0 0.0
        %630 = vmatmul.mubr.f32.gmra.mrb[0].mxu0 %v523
        %v631 = vpop.f32.mrb[0].mxu0
        %v632 = vadd.f32 %v513, %v631
        %v633 = vpop.f32.mrb[0].mxu0
        %634 = vmatprep.mubr.f32.mxu0 0.0
        %635 = vmatmul.mubr.f32.gmra.mrb[0].mxu0 %v526
        %v636 = vpop.f32.mrb[0].mxu0
        %v637 = vadd.f32 %v513, %v636
        %v638 = vpop.f32.mrb[0].mxu0
        %639 = vmatprep.mubr.f32.mxu0 0.0
        %640 = vmatmul.mubr.f32.gmra.mrb[0].mxu0 %v529
        %v641 = vpop.f32.mrb[0].mxu0
        %v642 = vadd.f32 %v513, %v641
        %v643 = vpop.f32.mrb[0].mxu0
        %644 = vmatprep.mubr.f32.mxu0 0.0
        %645 = vmatmul.mubr.f32.gmra.mrb[0].mxu0 %v532
        %v646 = vpop.f32.mrb[0].mxu0
        %v647 = vadd.f32 %v513, %v646
        %v648 = vpop.f32.mrb[0].mxu0
        %649 = vmatprep.mubr.f32.mxu0 0.0
        %650 = vmatmul.mubr.f32.gmra.mrb[0].mxu0 %v535
        %v651 = vpop.f32.mrb[0].mxu0
        %v652 = vadd.f32 %v513, %v651
        %v653 = vpop.f32.mrb[0].mxu0
        %654 = vmatprep.mubr.f32.mxu0 0.0
        %655 = vmatmul.mubr.f32.gmra.mrb[0].mxu0 %v538
        %v656 = vpop.f32.mrb[0].mxu0
        %v657 = vadd.f32 %v513, %v656
        %v658 = vpop.f32.mrb[0].mxu0
        %659 = vmatprep.mubr.f32.mxu0 0.0
        %660 = vmatmul.mubr.f32.gmra.mrb[0].mxu0 %v541
        %v661 = vpop.f32.mrb[0].mxu0
        %v662 = vadd.f32 %v513, %v661
        %v663 = vpop.f32.mrb[0].mxu0
        %664 = vmatprep.mubr.f32.mxu0 0.0
        %665 = vmatmul.mubr.f32.gmra.mrb[0].mxu0 %v544
        %v666 = vpop.f32.mrb[0].mxu0
        %v667 = vadd.f32 %v513, %v666
        %v668 = vpop.f32.mrb[0].mxu0
        %669 = vmatprep.mubr.f32.mxu0 0.0
        %670 = vmatmul.mubr.f32.gmra.mrb[0].mxu0 %v547
        %v671 = vpop.f32.mrb[0].mxu0
        %v672 = vadd.f32 %v513, %v671
        %v673 = vpop.f32.mrb[0].mxu0
        %674 = vmatprep.mubr.f32.mxu0 0.0
        %675 = vmatmul.mubr.f32.gmra.mrb[0].mxu0 %v550
        %v676 = vpop.f32.mrb[0].mxu0
        %v677 = vadd.f32 %v513, %v676
        %v678 = vpop.f32.mrb[0].mxu0
        %679 = vmatprep.mubr.f32.mxu0 0.0
        %680 = vmatmul.mubr.f32.gmra.mrb[0].mxu0 %v553
        %v681 = vpop.f32.mrb[0].mxu0
        %v682 = vadd.f32 %v513, %v681
        %v683 = vpop.f32.mrb[0].mxu0
        %684 = vdwg.mxu0
        %v685 = vmax.f32 %v622, 0.0
        %v686 = vmax.f32 %v627, 0.0
        %v687 = vmax.f32 %v632, 0.0
        %v688 = vmax.f32 %v637, 0.0
        %v689 = vmax.f32 %v642, 0.0
        %v690 = vmax.f32 %v647, 0.0
        %v691 = vmax.f32 %v652, 0.0
        %v692 = vmax.f32 %v657, 0.0
        %v693 = vmax.f32 %v662, 0.0
        %v694 = vmax.f32 %v667, 0.0
        %v695 = vmax.f32 %v672, 0.0
        %v696 = vmax.f32 %v677, 0.0
        %v697 = vmax.f32 %v682, 0.0
        %v698 = vld [vmem:[%s5] sm:$0xff]
        %v699 = vld [vmem:[%s5 + $0x8] sm:$0xff]
        %v700 = vld [vmem:[%s5 + $0x10] sm:$0xff]
        %v701 = vld [vmem:[%s5 + $0x18] sm:$0xff]
        %v702 = vld [vmem:[%s6] sm:$0x1]
        %v704 = vlaneseq
        %v705 = vshrl.u32 %v704, 7
        %v706 = vsub.s32 0, %v705
        %v707 = vrot.slane %v702, %v706
        %v710 = vsel %vm515, %v685, 0
        %v713 = vsel %vm515, %v686, 0
        %v716 = vsel %vm515, %v687, 0
        %v719 = vsel %vm515, %v688, 0
        %v722 = vsel %vm515, %v689, 0
        %v725 = vsel %vm515, %v690, 0
        %v728 = vsel %vm515, %v691, 0
        %v731 = vsel %vm515, %v692, 0
        %v734 = vsel %vm515, %v693, 0
        %v737 = vsel %vm515, %v694, 0
        %v740 = vsel %vm515, %v695, 0
        %v743 = vsel %vm515, %v696, 0
        %v746 = vsel %vm515, %v697, 0
        %748 = vmatprep.subr.mxu0 0.0
        %749 = vmatpush1.msra.mxu0 %v698
        %750 = vmatprep.subr.mxu0 0.0
        %751 = vmatpush1.msra.mxu0 %v699
        %752 = vmatprep.subr.mxu0 0.0
        %753 = vmatpush1.msra.mxu0 %v700
        %754 = vmatprep.subr.mxu0 0.0
        %755 = vmatpush1.msra.mxu0 %v701
        %756 = vmatprep.subr.mxu0 0.0
        %757 = vmatpush1.msra.mxu0 0.0
        %758 = vmatprep.subr.mxu0 0.0
        %759 = vmatpush1.msra.mxu0 0.0
        %760 = vmatprep.subr.mxu0 0.0
        %761 = vmatpush1.msra.mxu0 0.0
        %762 = vmatprep.subr.mxu0 0.0
        %763 = vmatpush1.msra.mxu0 0.0
        %764 = vmatprep.subr.mxu0 0.0
        %765 = vmatpush1.msra.mxu0 0.0
        %766 = vmatprep.subr.mxu0 0.0
        %767 = vmatpush1.msra.mxu0 0.0
        %768 = vmatprep.subr.mxu0 0.0
        %769 = vmatpush1.msra.mxu0 0.0
        %770 = vmatprep.subr.mxu0 0.0
        %771 = vmatpush1.msra.mxu0 0.0
        %772 = vmatprep.subr.mxu0 0.0
        %773 = vmatpush1.msra.mxu0 0.0
        %774 = vmatprep.subr.mxu0 0.0
        %775 = vmatpush1.msra.mxu0 0.0
        %776 = vmatprep.subr.mxu0 0.0
        %777 = vmatpush1.msra.mxu0 0.0
        %778 = vmatprep.subr.mxu0 0.0
        %779 = vmatpush1.msra.mxu0 0.0
        %780 = vmatprep.subr.mxu0 0.0
        %781 = vmatpush1.msra.mxu0 0.0
        %782 = vmatprep.subr.mxu0 0.0
        %783 = vmatpush1.msra.mxu0 0.0
        %784 = vmatprep.subr.mxu0 0.0
        %785 = vmatpush1.msra.mxu0 0.0
        %786 = vmatprep.subr.mxu0 0.0
        %787 = vmatpush1.msra.mxu0 0.0
        %788 = vmatprep.subr.mxu0 0.0
        %789 = vmatpush1.msra.mxu0 0.0
        %790 = vmatprep.subr.mxu0 0.0
        %791 = vmatpush1.msra.mxu0 0.0
        %792 = vmatprep.subr.mxu0 0.0
        %793 = vmatpush1.msra.mxu0 0.0
        %794 = vmatprep.subr.mxu0 0.0
        %795 = vmatpush1.msra.mxu0 0.0
        %796 = vmatprep.subr.mxu0 0.0
        %797 = vmatpush1.msra.mxu0 0.0
        %798 = vmatprep.subr.mxu0 0.0
        %799 = vmatpush1.msra.mxu0 0.0
        %800 = vmatprep.subr.mxu0 0.0
        %801 = vmatpush1.msra.mxu0 0.0
        %802 = vmatprep.subr.mxu0 0.0
        %803 = vmatpush1.msra.mxu0 0.0
        %804 = vmatprep.subr.mxu0 0.0
        %805 = vmatpush1.msra.mxu0 0.0
        %806 = vmatprep.subr.mxu0 0.0
        %807 = vmatpush1.msra.mxu0 0.0
        %808 = vmatprep.subr.mxu0 0.0
        %809 = vmatpush1.msra.mxu0 0.0
        %810 = vmatprep.subr.mxu0 0.0
        %811 = vmatpush1.msra.mxu0 0.0
        %812 = vmatprep.mubr.f32.mxu0 0.0
        %813 = vmatmul.mubr.f32.gmra.mrb[0].mxu0 %v710
        %v814 = vpop.f32.mrb[0].mxu0
        %v815 = vadd.f32 %v707, %v814
        %v816 = vpop.f32.mrb[0].mxu0
        %817 = vmatprep.mubr.f32.mxu0 0.0
        %818 = vmatmul.mubr.f32.gmra.mrb[0].mxu0 %v713
        %v819 = vpop.f32.mrb[0].mxu0
        %v820 = vadd.f32 %v707, %v819
        %v821 = vpop.f32.mrb[0].mxu0
        %822 = vmatprep.mubr.f32.mxu0 0.0
        %823 = vmatmul.mubr.f32.gmra.mrb[0].mxu0 %v716
        %v824 = vpop.f32.mrb[0].mxu0
        %v825 = vadd.f32 %v707, %v824
        %v826 = vpop.f32.mrb[0].mxu0
        %827 = vmatprep.mubr.f32.mxu0 0.0
        %828 = vmatmul.mubr.f32.gmra.mrb[0].mxu0 %v719
        %v829 = vpop.f32.mrb[0].mxu0
        %v830 = vadd.f32 %v707, %v829
        %v831 = vpop.f32.mrb[0].mxu0
        %832 = vmatprep.mubr.f32.mxu0 0.0
        %833 = vmatmul.mubr.f32.gmra.mrb[0].mxu0 %v722
        %v834 = vpop.f32.mrb[0].mxu0
        %v835 = vadd.f32 %v707, %v834
        %v836 = vpop.f32.mrb[0].mxu0
        %837 = vmatprep.mubr.f32.mxu0 0.0
        %838 = vmatmul.mubr.f32.gmra.mrb[0].mxu0 %v725
        %v839 = vpop.f32.mrb[0].mxu0
        %v840 = vadd.f32 %v707, %v839
        %v841 = vpop.f32.mrb[0].mxu0
        %842 = vmatprep.mubr.f32.mxu0 0.0
        %843 = vmatmul.mubr.f32.gmra.mrb[0].mxu0 %v728
        %v844 = vpop.f32.mrb[0].mxu0
        %v845 = vadd.f32 %v707, %v844
        %v846 = vpop.f32.mrb[0].mxu0
        %847 = vmatprep.mubr.f32.mxu0 0.0
        %848 = vmatmul.mubr.f32.gmra.mrb[0].mxu0 %v731
        %v849 = vpop.f32.mrb[0].mxu0
        %v850 = vadd.f32 %v707, %v849
        %v851 = vpop.f32.mrb[0].mxu0
        %852 = vmatprep.mubr.f32.mxu0 0.0
        %853 = vmatmul.mubr.f32.gmra.mrb[0].mxu0 %v734
        %v854 = vpop.f32.mrb[0].mxu0
        %v855 = vadd.f32 %v707, %v854
        %v856 = vpop.f32.mrb[0].mxu0
        %857 = vmatprep.mubr.f32.mxu0 0.0
        %858 = vmatmul.mubr.f32.gmra.mrb[0].mxu0 %v737
        %v859 = vpop.f32.mrb[0].mxu0
        %v860 = vadd.f32 %v707, %v859
        %v861 = vpop.f32.mrb[0].mxu0
        %862 = vmatprep.mubr.f32.mxu0 0.0
        %863 = vmatmul.mubr.f32.gmra.mrb[0].mxu0 %v740
        %v864 = vpop.f32.mrb[0].mxu0
        %v865 = vadd.f32 %v707, %v864
        %v866 = vpop.f32.mrb[0].mxu0
        %867 = vmatprep.mubr.f32.mxu0 0.0
        %868 = vmatmul.mubr.f32.gmra.mrb[0].mxu0 %v743
        %v869 = vpop.f32.mrb[0].mxu0
        %v870 = vadd.f32 %v707, %v869
        %v871 = vpop.f32.mrb[0].mxu0
        %872 = vmatprep.mubr.f32.mxu0 0.0
        %873 = vmatmul.mubr.f32.gmra.mrb[0].mxu0 %v746
        %v874 = vpop.f32.mrb[0].mxu0
        %v875 = vadd.f32 %v707, %v874
        %v876 = vpop.f32.mrb[0].mxu0
        %877 = vdwg.mxu0
        %vm878 = vcmask 130048
        %879 = vst.msk [vmem:[%s280] sm:$0xff] %vm878, %v815
        %880 = vst.msk [vmem:[%s280 + $0x8] sm:$0xff] %vm878, %v820
        %881 = vst.msk [vmem:[%s280 + $0x10] sm:$0xff] %vm878, %v825
        %882 = vst.msk [vmem:[%s280 + $0x18] sm:$0xff] %vm878, %v830
        %883 = vst.msk [vmem:[%s280 + $0x20] sm:$0xff] %vm878, %v835
        %884 = vst.msk [vmem:[%s280 + $0x28] sm:$0xff] %vm878, %v840
        %885 = vst.msk [vmem:[%s280 + $0x30] sm:$0xff] %vm878, %v845
        %886 = vst.msk [vmem:[%s280 + $0x38] sm:$0xff] %vm878, %v850
        %887 = vst.msk [vmem:[%s280 + $0x40] sm:$0xff] %vm878, %v855
        %888 = vst.msk [vmem:[%s280 + $0x48] sm:$0xff] %vm878, %v860
        %889 = vst.msk [vmem:[%s280 + $0x50] sm:$0xff] %vm878, %v865
        %890 = vst.msk [vmem:[%s280 + $0x58] sm:$0xff] %vm878, %v870
        %891 = vst.msk [vmem:[%s280 + $0x60] sm:$0xff] %vm878, %v875
        %s892 = sand.u32 %s178, 1
        %s893 = sand.u32 %s178, 1
        %s894 = smul.addr %s893, 104
        %s895 = scalar_lea.vmem [#allocation2], %s894
        // Predicated region
        $region49: #{tpu_custom_call.1} parent=47 // pred_check
          %p896 = pneg %p188
        $region50: #{tpu_custom_call.1} parent=47 // pred_check_branch
          %898 = sbr.rel (%p896) target = $region52
        $region51: #{tpu_custom_call.1} parent=47 // pred_region
          %s899 = smul.u32 13, %s18
          %s900 = ssub.s32 25, %s899
          %p901 = scmp.lt.s32.totalorder %s900, 13
          %s902 = scalar_select %p901, %s900, 13
          %s903 = smul.u32 128, %s902
          %p904 = scmp.ne.s32.totalorder 0, %s903
          %s905 = smul.addr %s899, 8
          %s906 = scalar_lea.vmem %s7, %s905
          // Predicated region
          $region53: #{tpu_custom_call.1} parent=51 // pred_check
            %p907 = pneg %p904
          $region54: #{tpu_custom_call.1} parent=51 // pred_check_branch
            %909 = sbr.rel (%p907) target = $region56
          $region55: #{tpu_custom_call.1} parent=51 // pred_region
            // Predicated region
            $region57: #{tpu_custom_call.1} parent=55 // pred_check
              _
            $region58: #{tpu_custom_call.1} parent=55 // pred_check_branch
              %911 = sbr.rel (0) target = $region60
            $region59: #{tpu_custom_call.1} parent=55 // pred_region
              // Predicated region
              $region79: #{tpu_custom_call.1} parent=59 // pred_check
                _
              $region80: #{tpu_custom_call.1} parent=59 // pred_check_branch
                %985 = sbr.rel (0) target = $region82
              $region81: #{tpu_custom_call.1} parent=59 // pred_region
                %s986 = sdiv.u32.pop %s902, 13
                %s987 = srem.u32.pop %s902, 13
                // While loop
                $region83: #{tpu_custom_call.1} parent=81 // loop_pre_header
                  _
                $region84: #{tpu_custom_call.1} parent=81 // loop_header
                  %s989 = sphi 0, %s991
                  %p990 = scmp.ge.s32.totalorder %s989, %s986
                  %s994 = sphi 0, %s1025
                  %s995 = sphi %s895, %s1028
                  %s996 = sphi %s906, %s1029
                $region85: #{tpu_custom_call.1} parent=81 // loop_header_branch
                  %993 = sbr.rel (%p990) target = $region89
                $region86: #{tpu_custom_call.1} parent=81 // loop_body
                  %v997 = vld [vmem:[%s995] sm:$0xff]
                  %998 = vst [vmem:[%s996] sm:$0xff] %v997
                  %v999 = vld [vmem:[%s995 + $0x8] sm:$0xff]
                  %1000 = vst [vmem:[%s996 + $0x8] sm:$0xff] %v999
                  %v1001 = vld [vmem:[%s995 + $0x10] sm:$0xff]
                  %1002 = vst [vmem:[%s996 + $0x10] sm:$0xff] %v1001
                  %v1003 = vld [vmem:[%s995 + $0x18] sm:$0xff]
                  %1004 = vst [vmem:[%s996 + $0x18] sm:$0xff] %v1003
                  %v1005 = vld [vmem:[%s995 + $0x20] sm:$0xff]
                  %1006 = vst [vmem:[%s996 + $0x20] sm:$0xff] %v1005
                  %v1007 = vld [vmem:[%s995 + $0x28] sm:$0xff]
                  %1008 = vst [vmem:[%s996 + $0x28] sm:$0xff] %v1007
                  %v1009 = vld [vmem:[%s995 + $0x30] sm:$0xff]
                  %1010 = vst [vmem:[%s996 + $0x30] sm:$0xff] %v1009
                  %v1011 = vld [vmem:[%s995 + $0x38] sm:$0xff]
                  %1012 = vst [vmem:[%s996 + $0x38] sm:$0xff] %v1011
                  %v1013 = vld [vmem:[%s995 + $0x40] sm:$0xff]
                  %1014 = vst [vmem:[%s996 + $0x40] sm:$0xff] %v1013
                  %v1015 = vld [vmem:[%s995 + $0x48] sm:$0xff]
                  %1016 = vst [vmem:[%s996 + $0x48] sm:$0xff] %v1015
                  %v1017 = vld [vmem:[%s995 + $0x50] sm:$0xff]
                  %1018 = vst [vmem:[%s996 + $0x50] sm:$0xff] %v1017
                  %v1019 = vld [vmem:[%s995 + $0x58] sm:$0xff]
                  %1020 = vst [vmem:[%s996 + $0x58] sm:$0xff] %v1019
                  %v1021 = vld [vmem:[%s995 + $0x60] sm:$0xff]
                  %1022 = vst [vmem:[%s996 + $0x60] sm:$0xff] %v1021
                  %s1023 = sadd.s32 1, %s994
                  %p1024 = scmp.ge.s32.totalorder %s1023, %s986
                  %s1025 = scalar_select %p1024, 0, %s1023
                  %s1026 = smul.u32 %s1025, 104
                  %s1027 = smul.u32 %s1025, 104
                  %s1028 = scalar_lea.vmem %s895, %s1026 [#allocation2]
                  %s1029 = scalar_lea.vmem %s906, %s1027
                $region87: #{tpu_custom_call.1} parent=81 // loop_footer
                  %s991 = sadd.s32 %s989, 1
                $region88: #{tpu_custom_call.1} parent=81 // loop_footer_branch
                  %988 = sbr.rel target = $region84
                $region89: #{tpu_custom_call.1} parent=81 // loop_exit
                  _
                %s1030 = sdiv.u32.pop %s902, 13
                %s1031 = srem.u32.pop %s902, 13
                %s1032 = smul.u32 %s1030, 13
                %s1033 = smul.u32 8, %s1032
                %s1034 = scalar_lea.vmem %s895, %s1033 [#allocation2]
                %s1035 = smul.u32 8, %s1032
                %s1036 = scalar_lea.vmem %s906, %s1035
                // While loop
                $region90: #{tpu_custom_call.1} parent=81 // loop_pre_header
                  _
                $region91: #{tpu_custom_call.1} parent=81 // loop_header
                  %s1038 = sphi 0, %s1040
                  %p1039 = scmp.ge.s32.totalorder %s1038, %s1031
                  %s1043 = sphi 0, %s1050
                  %s1044 = sphi %s1034, %s1053
                  %s1045 = sphi %s1036, %s1054
                $region92: #{tpu_custom_call.1} parent=81 // loop_header_branch
                  %1042 = sbr.rel (%p1039) target = $region96
                $region93: #{tpu_custom_call.1} parent=81 // loop_body
                  %v1046 = vld [vmem:[%s1044] sm:$0xff]
                  %1047 = vst [vmem:[%s1045] sm:$0xff] %v1046
                  %s1048 = sadd.s32 1, %s1043
                  %p1049 = scmp.ge.s32.totalorder %s1048, %s1031
                  %s1050 = scalar_select %p1049, 0, %s1048
                  %s1051 = smul.u32 %s1050, 8
                  %s1052 = smul.u32 %s1050, 8
                  %s1053 = scalar_lea.vmem %s1034, %s1051 [#allocation2]
                  %s1054 = scalar_lea.vmem %s1036, %s1052
                $region94: #{tpu_custom_call.1} parent=81 // loop_footer
                  %s1040 = sadd.s32 %s1038, 1
                $region95: #{tpu_custom_call.1} parent=81 // loop_footer_branch
                  %1037 = sbr.rel target = $region91
                $region96: #{tpu_custom_call.1} parent=81 // loop_exit
                  _
              $region82: #{tpu_custom_call.1} parent=59 // pred_fallthru
                _
              // Predicated region
              $region97: #{tpu_custom_call.1} parent=59 // pred_check
                _
              $region98: #{tpu_custom_call.1} parent=59 // pred_check_branch
                %1056 = sbr.rel target = $region100
              $region99: #{tpu_custom_call.1} parent=59 // pred_region
                _
              $region100: #{tpu_custom_call.1} parent=59 // pred_fallthru
                _
            $region60: #{tpu_custom_call.1} parent=55 // pred_fallthru
              _
            // Predicated region
            $region61: #{tpu_custom_call.1} parent=55 // pred_check
              _
            $region62: #{tpu_custom_call.1} parent=55 // pred_check_branch
              %913 = sbr.rel target = $region64
            $region63: #{tpu_custom_call.1} parent=55 // pred_region
              %s915 = sdiv.u32.pop %s902, 13
              %s916 = srem.u32.pop %s902, 13
              // While loop
              $region65: #{tpu_custom_call.1} parent=63 // loop_pre_header
                _
              $region66: #{tpu_custom_call.1} parent=63 // loop_header
                %s918 = sphi 0, %s920
                %p919 = scmp.ge.s32.totalorder %s918, %s915
                %s923 = sphi 0, %s954
                %s924 = sphi %s895, %s957
                %s925 = sphi %s906, %s958
              $region67: #{tpu_custom_call.1} parent=63 // loop_header_branch
                %922 = sbr.rel (%p919) target = $region71
              $region68: #{tpu_custom_call.1} parent=63 // loop_body
                %v926 = vld [vmem:[%s924] sm:$0xff]
                %927 = vst [vmem:[%s925] sm:$0xff] %v926
                %v928 = vld [vmem:[%s924 + $0x8] sm:$0xff]
                %929 = vst [vmem:[%s925 + $0x8] sm:$0xff] %v928
                %v930 = vld [vmem:[%s924 + $0x10] sm:$0xff]
                %931 = vst [vmem:[%s925 + $0x10] sm:$0xff] %v930
                %v932 = vld [vmem:[%s924 + $0x18] sm:$0xff]
                %933 = vst [vmem:[%s925 + $0x18] sm:$0xff] %v932
                %v934 = vld [vmem:[%s924 + $0x20] sm:$0xff]
                %935 = vst [vmem:[%s925 + $0x20] sm:$0xff] %v934
                %v936 = vld [vmem:[%s924 + $0x28] sm:$0xff]
                %937 = vst [vmem:[%s925 + $0x28] sm:$0xff] %v936
                %v938 = vld [vmem:[%s924 + $0x30] sm:$0xff]
                %939 = vst [vmem:[%s925 + $0x30] sm:$0xff] %v938
                %v940 = vld [vmem:[%s924 + $0x38] sm:$0xff]
                %941 = vst [vmem:[%s925 + $0x38] sm:$0xff] %v940
                %v942 = vld [vmem:[%s924 + $0x40] sm:$0xff]
                %943 = vst [vmem:[%s925 + $0x40] sm:$0xff] %v942
                %v944 = vld [vmem:[%s924 + $0x48] sm:$0xff]
                %945 = vst [vmem:[%s925 + $0x48] sm:$0xff] %v944
                %v946 = vld [vmem:[%s924 + $0x50] sm:$0xff]
                %947 = vst [vmem:[%s925 + $0x50] sm:$0xff] %v946
                %v948 = vld [vmem:[%s924 + $0x58] sm:$0xff]
                %949 = vst [vmem:[%s925 + $0x58] sm:$0xff] %v948
                %v950 = vld [vmem:[%s924 + $0x60] sm:$0xff]
                %951 = vst [vmem:[%s925 + $0x60] sm:$0xff] %v950
                %s952 = sadd.s32 1, %s923
                %p953 = scmp.ge.s32.totalorder %s952, %s915
                %s954 = scalar_select %p953, 0, %s952
                %s955 = smul.u32 %s954, 104
                %s956 = smul.u32 %s954, 104
                %s957 = scalar_lea.vmem %s895, %s955 [#allocation2]
                %s958 = scalar_lea.vmem %s906, %s956
              $region69: #{tpu_custom_call.1} parent=63 // loop_footer
                %s920 = sadd.s32 %s918, 1
              $region70: #{tpu_custom_call.1} parent=63 // loop_footer_branch
                %917 = sbr.rel target = $region66
              $region71: #{tpu_custom_call.1} parent=63 // loop_exit
                _
              %s959 = sdiv.u32.pop %s902, 13
              %s960 = srem.u32.pop %s902, 13
              %s961 = smul.u32 %s959, 13
              %s962 = smul.u32 8, %s961
              %s963 = scalar_lea.vmem %s895, %s962 [#allocation2]
              %s964 = smul.u32 8, %s961
              %s965 = scalar_lea.vmem %s906, %s964
              // While loop
              $region72: #{tpu_custom_call.1} parent=63 // loop_pre_header
                _
              $region73: #{tpu_custom_call.1} parent=63 // loop_header
                %s967 = sphi 0, %s969
                %p968 = scmp.ge.s32.totalorder %s967, %s960
                %s972 = sphi 0, %s979
                %s973 = sphi %s963, %s982
                %s974 = sphi %s965, %s983
              $region74: #{tpu_custom_call.1} parent=63 // loop_header_branch
                %971 = sbr.rel (%p968) target = $region78
              $region75: #{tpu_custom_call.1} parent=63 // loop_body
                %v975 = vld [vmem:[%s973] sm:$0xff]
                %976 = vst [vmem:[%s974] sm:$0xff] %v975
                %s977 = sadd.s32 1, %s972
                %p978 = scmp.ge.s32.totalorder %s977, %s960
                %s979 = scalar_select %p978, 0, %s977
                %s980 = smul.u32 %s979, 8
                %s981 = smul.u32 %s979, 8
                %s982 = scalar_lea.vmem %s963, %s980 [#allocation2]
                %s983 = scalar_lea.vmem %s965, %s981
              $region76: #{tpu_custom_call.1} parent=63 // loop_footer
                %s969 = sadd.s32 %s967, 1
              $region77: #{tpu_custom_call.1} parent=63 // loop_footer_branch
                %966 = sbr.rel target = $region73
              $region78: #{tpu_custom_call.1} parent=63 // loop_exit
                _
            $region64: #{tpu_custom_call.1} parent=55 // pred_fallthru
              _
          $region56: #{tpu_custom_call.1} parent=51 // pred_fallthru
            _
          %1057 = vnop
        $region52: #{tpu_custom_call.1} parent=47 // pred_fallthru
          _
      $region48: #{tpu_custom_call.1} parent=5 // pred_fallthru
        _
      %p1058 = scmp.le.s32.totalorder 2, %s13
      // Predicated region
      $region101: #{tpu_custom_call.1} parent=5 // pred_check
        %p1059 = pneg %p1058
      $region102: #{tpu_custom_call.1} parent=5 // pred_check_branch
        %1061 = sbr.rel (%p1059) target = $region104
      $region103: #{tpu_custom_call.1} parent=5 // pred_region
        %s1062 = ssub.s32 %s13, 2
        // Predicated region
        $region105: #{tpu_custom_call.1} parent=103 // pred_check
          %p1063 = pneg %p194
        $region106: #{tpu_custom_call.1} parent=103 // pred_check_branch
          %1065 = sbr.rel (%p1063) target = $region108
        $region107: #{tpu_custom_call.1} parent=103 // pred_region
          %s1066 = sand.u32 %s179, 1
          %s1067 = sand.u32 %s179, 1
          %s1068 = smul.addr %s1067, 104
          %s1069 = scalar_lea.vmem [#allocation2], %s1068
        $region108: #{tpu_custom_call.1} parent=103 // pred_fallthru
          _
      $region104: #{tpu_custom_call.1} parent=5 // pred_fallthru
        _
    $region6: #{tpu_custom_call.1} parent=1 // loop_footer
      %s17 = sadd.s32 1, %s13
    $region7: #{tpu_custom_call.1} parent=1 // loop_footer_branch
      %12 = sbr.rel target = $region3
    $region8: #{tpu_custom_call.1} parent=1 // loop_exit
      _

</llo_original>
